<compile_context>
chip_gen: v5e
topology: v5e:2x2
jax: 0.10.0
libtpu: 0.0.40
codegen_flags: <defaults>
</compile_context>

<pallas_src>
import functools

import jax
import jax.numpy as jnp
from jax.experimental import pallas as pl
from jax.experimental.pallas import tpu as pltpu

GCN_DEPTH = 2
ALPHA = 0.3
LN_EPS = 1e-5


def graph_gru_kernel(
    x_ref, h_ref, p_ref,
    w_big_ref, wch_ref, b_all_ref,
    gamma_ref, beta_ref,
    out_ref,
):
    dot = functools.partial(jnp.dot, preferred_element_type=jnp.float32)
    n = x_ref.shape[1]
    hdim = h_ref.shape[2]

    x = x_ref[0]                                     # (N, Din)  f32
    h = h_ref[0]                                     # (N, H)    f32

    # hop 0 of the reference's `combined` = [x | h].
    xh = jnp.concatenate([x, h], axis=-1).astype(jnp.bfloat16)      # (N, C)

    # Both higher hops of [x|h] in ONE dot against the row-stacked P.
    p = p_ref[...]                                   # (K*N, N)  bf16
    hops = dot(p, xh)                                # (K*N, C)  f32 acc
    hxh = jnp.concatenate(
        [xh] + [hops[k * n:(k + 1) * n].astype(jnp.bfloat16)
                for k in range(GCN_DEPTH)],
        axis=-1)                                     # (N, (K+1)*C)  bf16

    # Fused projection: columns = [update | reset | cell (x-rows only)].
    proj = dot(hxh, w_big_ref[...]) + b_all_ref[...]                 # (N, 3H) f32
    update_gate = jax.nn.sigmoid(proj[:, :hdim])
    reset_gate = jax.nn.sigmoid(proj[:, hdim:2 * hdim])

    # Cell state: hops of (reset_gate * h) must be fresh.
    rh = (reset_gate * h).astype(jnp.bfloat16)                       # (N, H)
    rh_hops = dot(p, rh)                                             # (K*N, H)
    hrh = jnp.concatenate(
        [rh] + [rh_hops[k * n:(k + 1) * n].astype(jnp.bfloat16)
                for k in range(GCN_DEPTH)],
        axis=-1)                                     # (N, (K+1)*H)  bf16
    cell_state = jnp.tanh(proj[:, 2 * hdim:] + dot(hrh, wch_ref[...]))

    nxt = update_gate * h + (1.0 - update_gate) * cell_state

    # LayerNorm over the hidden dim (biased variance, like nn.LayerNorm).
    mean = jnp.mean(nxt, axis=-1, keepdims=True)
    var = jnp.mean((nxt - mean) ** 2, axis=-1, keepdims=True)
    normed = (nxt - mean) * jax.lax.rsqrt(var + LN_EPS)
    out_ref[0] = normed * gamma_ref[...] + beta_ref[...]


def graph_gru_forward(x, hidden, adj, params):
    """Returns (output, next_hidden) like the torch module (they are identical)."""
    B, N, Din = x.shape
    H = hidden.shape[-1]
    C = Din + H
    K = GCN_DEPTH

    # Propagation matrices P_{k+1} = a*I + (1-a)*A @ P_k, P_0 = I (kept (N, N),
    # stacked on rows so both hops come from one MXU dot).
    eye_n = jnp.eye(N, dtype=jnp.float32)
    props = []
    p = eye_n
    for _ in range(K):
        p = ALPHA * eye_n + (1.0 - ALPHA) * jnp.dot(adj, p)
        props.append(p)
    p_rows = jnp.concatenate(props, axis=0).astype(jnp.bfloat16)      # (K*N, N)

    # Fused weights.  mixprop weight rows are ordered hop-major, [x-rows | h-rows]
    # within each hop block (combined = [x | h]).
    wu3 = params["wu"].reshape(K + 1, C, H)
    wr3 = params["wr"].reshape(K + 1, C, H)
    wc3 = params["wc"].reshape(K + 1, C, H)
    wc_xonly = wc3.at[:, Din:, :].set(0.0).reshape((K + 1) * C, H)
    w_big = jnp.concatenate(
        [params["wu"], params["wr"], wc_xonly], axis=-1
    ).astype(jnp.bfloat16)                                            # ((K+1)*C, 3H)
    wc_h = wc3[:, Din:, :].reshape((K + 1) * H, H).astype(jnp.bfloat16)
    b_all = jnp.concatenate(
        [params["bu"], params["br"], params["bc"]], axis=-1)          # (1, 3H) f32

    def const_spec(shape):
        return pl.BlockSpec(shape, lambda b, _s=shape: (0,) * len(_s))

    out = pl.pallas_call(
        graph_gru_kernel,
        out_shape=jax.ShapeDtypeStruct((B, N, H), jnp.float32),
        grid_spec=pltpu.PrefetchScalarGridSpec(
            num_scalar_prefetch=0,
            grid=(B,),
            in_specs=[
                pl.BlockSpec((1, N, Din), lambda b: (b, 0, 0)),   # x, streamed per graph
                pl.BlockSpec((1, N, H), lambda b: (b, 0, 0)),     # hidden, streamed
                const_spec((K * N, N)),                           # stacked P (resident)
                const_spec(((K + 1) * C, 3 * H)),                 # fused [Wu|Wr|Wc_x]
                const_spec(((K + 1) * H, H)),                     # Wc_h
                const_spec((1, 3 * H)),                           # fused bias
                const_spec((1, H)),                               # ln gamma
                const_spec((1, H)),                               # ln beta
            ],
            out_specs=pl.BlockSpec((1, N, H), lambda b: (b, 0, 0)),
        ),
        compiler_params=pltpu.CompilerParams(
            dimension_semantics=("parallel",),
            vmem_limit_bytes=32 * 1024 * 1024,
        ),
        input_output_aliases={1: 0},   # hidden -> output (output == next_hidden)
    )(x, hidden, p_rows, w_big, wc_h, b_all, params["gamma"], params["beta"])
    return out, out


def graph_gru_reference(x, hidden, adj, params):
    """Pure-JAX f32 reference using the original sequential-hop / concat formulation."""
    def mixprop(xin, w, b):
        h = xin
        outs = [h]
        for _ in range(GCN_DEPTH):
            h = ALPHA * xin + (1.0 - ALPHA) * jnp.einsum("nm,bmc->bnc", adj, h)
            outs.append(h)
        ho = jnp.concatenate(outs, axis=-1)
        return jnp.einsum("bnc,ch->bnh", ho, w) + b[0]

    combined = jnp.concatenate([x, hidden], axis=-1)
    u = jax.nn.sigmoid(mixprop(combined, params["wu"], params["bu"]))
    r = jax.nn.sigmoid(mixprop(combined, params["wr"], params["br"]))
    temp = jnp.concatenate([x, r * hidden], axis=-1)
    c = jnp.tanh(mixprop(temp, params["wc"], params["bc"]))
    nxt = u * hidden + (1.0 - u) * c
    mean = jnp.mean(nxt, axis=-1, keepdims=True)
    var = jnp.mean((nxt - mean) ** 2, axis=-1, keepdims=True)
    normed = (nxt - mean) * jax.lax.rsqrt(var + LN_EPS)
    return normed * params["gamma"][0] + params["beta"][0]


def init_params(key, in_dim, hidden_dim):
    c = in_dim + hidden_dim
    wdim = (GCN_DEPTH + 1) * c
    ks = jax.random.split(key, 6)
    scale = 1.0 / jnp.sqrt(jnp.float32(wdim))
    return {
        "wu": jax.random.uniform(ks[0], (wdim, hidden_dim), jnp.float32, -scale, scale),
        "bu": jax.random.uniform(ks[1], (1, hidden_dim), jnp.float32, -scale, scale),
        "wr": jax.random.uniform(ks[2], (wdim, hidden_dim), jnp.float32, -scale, scale),
        "br": jax.random.uniform(ks[3], (1, hidden_dim), jnp.float32, -scale, scale),
        "wc": jax.random.uniform(ks[4], (wdim, hidden_dim), jnp.float32, -scale, scale),
        "bc": jax.random.uniform(ks[5], (1, hidden_dim), jnp.float32, -scale, scale),
        "gamma": jnp.ones((1, hidden_dim), jnp.float32),
        "beta": jnp.zeros((1, hidden_dim), jnp.float32),
    }


if __name__ == "__main__":
    B, N, IN_DIM, HIDDEN = 2, 16, 4, 32

    key = jax.random.PRNGKey(0)
    k_x, k_h, k_a, k_p = jax.random.split(key, 4)

    x = jax.random.normal(k_x, (B, N, IN_DIM), jnp.float32)
    # torch code draws hidden_state ~ randn when None; we pass it explicitly (deterministic).
    hidden = jax.random.normal(k_h, (B, N, HIDDEN), jnp.float32)

    # Row-normalized random adjacency ("norm_adj" is pre-normalized upstream).
    raw_adj = jnp.abs(jax.random.normal(k_a, (N, N), jnp.float32)) + jnp.eye(N)
    adj = raw_adj / jnp.sum(raw_adj, axis=1, keepdims=True)

    params = init_params(k_p, IN_DIM, HIDDEN)

    # Reference is computed BEFORE the kernel call: the kernel aliases `hidden`
    # into its output, so we do not rely on `hidden` afterwards.
    ref = jax.block_until_ready(graph_gru_reference(x, hidden, adj, params))

    output, next_hidden = graph_gru_forward(x, hidden, adj, params)
    output = jax.block_until_ready(output)

    assert output.shape == (B, N, HIDDEN)
    # Tolerance loosened (vs. pure-f32) because MXU operands are bf16 with f32
    # accumulation; gates/tanh/LayerNorm are still f32.
    assert jnp.allclose(output, ref, rtol=5e-2, atol=5e-2), "mismatch vs reference"

    print("KERNEL_OK")
</pallas_src>

<mosaic_0001>
module attributes {stable_mosaic.version = 11 : i64} {
  func.func @graph_gru_kernel(%arg0: i32, %arg1: memref<1x16x4xf32, #tpu.memory_space<vmem>>, %arg2: memref<1x16x32xf32, #tpu.memory_space<vmem>>, %arg3: memref<32x16xbf16, #tpu.memory_space<vmem>>, %arg4: memref<108x96xbf16, #tpu.memory_space<vmem>>, %arg5: memref<96x32xbf16, #tpu.memory_space<vmem>>, %arg6: memref<1x96xf32, #tpu.memory_space<vmem>>, %arg7: memref<1x32xf32, #tpu.memory_space<vmem>>, %arg8: memref<1x32xf32, #tpu.memory_space<vmem>>, %arg9: memref<1x16x32xf32, #tpu.memory_space<vmem>>) attributes {dimension_semantics = [#tpu.dimension_semantics<parallel>], iteration_bounds = array<i64: 2>, scalar_prefetch = 0 : i64, scratch_operands = 0 : i64, tpu.core_type = #tpu.core_type<tc>, window_params = [{transform_indices = @transform_0, window_bounds = array<i64: 1, 16, 4>}, {transform_indices = @transform_1, window_bounds = array<i64: 1, 16, 32>}, {pipeline_mode = #tpu.pipeline_mode<synchronous>, transform_indices = @transform_2, window_bounds = array<i64: 32, 16>}, {pipeline_mode = #tpu.pipeline_mode<synchronous>, transform_indices = @transform_3, window_bounds = array<i64: 108, 96>}, {pipeline_mode = #tpu.pipeline_mode<synchronous>, transform_indices = @transform_4, window_bounds = array<i64: 96, 32>}, {pipeline_mode = #tpu.pipeline_mode<synchronous>, transform_indices = @transform_5, window_bounds = array<i64: 1, 96>}, {pipeline_mode = #tpu.pipeline_mode<synchronous>, transform_indices = @transform_6, window_bounds = array<i64: 1, 32>}, {pipeline_mode = #tpu.pipeline_mode<synchronous>, transform_indices = @transform_7, window_bounds = array<i64: 1, 32>}, {transform_indices = @transform_8, window_bounds = array<i64: 1, 16, 32>}]} {
    %c0 = arith.constant 0 : index
    %c0_0 = arith.constant 0 : index
    %c0_1 = arith.constant 0 : index
    %0 = vector.load %arg1[%c0, %c0_0, %c0_1] : memref<1x16x4xf32, #tpu.memory_space<vmem>>, vector<1x16x4xf32>
    %1 = vector.shape_cast %0 : vector<1x16x4xf32> to vector<16x4xf32>
    %c0_2 = arith.constant 0 : index
    %c0_3 = arith.constant 0 : index
    %c0_4 = arith.constant 0 : index
    %2 = vector.load %arg2[%c0_2, %c0_3, %c0_4] : memref<1x16x32xf32, #tpu.memory_space<vmem>>, vector<1x16x32xf32>
    %3 = vector.shape_cast %2 : vector<1x16x32xf32> to vector<16x32xf32>
    %4 = tpu.concatenate %1, %3 in 1 : vector<16x4xf32>, vector<16x32xf32> -> vector<16x36xf32>
    %5 = arith.truncf %4 : vector<16x36xf32> to vector<16x36xbf16>
    %c0_5 = arith.constant 0 : index
    %c0_6 = arith.constant 0 : index
    %6 = vector.load %arg3[%c0_5, %c0_6] : memref<32x16xbf16, #tpu.memory_space<vmem>>, vector<32x16xbf16>
    %cst = arith.constant dense<0.000000e+00> : vector<32x36xf32>
    %7 = tpu.matmul %6, %5, %cst {dimension_numbers = #tpu.dot_dimension_numbers<[1], [0], [0], [1], [0, 0, 1, 1], [], []>} : vector<32x16xbf16>, vector<16x36xbf16>, vector<32x36xf32> -> vector<32x36xf32>
    %8 = vector.extract_strided_slice %7 {offsets = [0, 0], sizes = [16, 36], strides = [1, 1]} : vector<32x36xf32> to vector<16x36xf32>
    %9 = arith.truncf %8 : vector<16x36xf32> to vector<16x36xbf16>
    %10 = vector.extract_strided_slice %7 {offsets = [16, 0], sizes = [16, 36], strides = [1, 1]} : vector<32x36xf32> to vector<16x36xf32>
    %11 = arith.truncf %10 : vector<16x36xf32> to vector<16x36xbf16>
    %12 = tpu.concatenate %5, %9, %11 in 1 : vector<16x36xbf16>, vector<16x36xbf16>, vector<16x36xbf16> -> vector<16x108xbf16>
    %c0_7 = arith.constant 0 : index
    %c0_8 = arith.constant 0 : index
    %13 = vector.load %arg4[%c0_7, %c0_8] : memref<108x96xbf16, #tpu.memory_space<vmem>>, vector<108x96xbf16>
    %cst_9 = arith.constant dense<0.000000e+00> : vector<16x96xf32>
    %14 = tpu.matmul %12, %13, %cst_9 {dimension_numbers = #tpu.dot_dimension_numbers<[1], [0], [0], [1], [0, 0, 1, 1], [], []>} : vector<16x108xbf16>, vector<108x96xbf16>, vector<16x96xf32> -> vector<16x96xf32>
    %c0_10 = arith.constant 0 : index
    %c0_11 = arith.constant 0 : index
    %15 = vector.load %arg6[%c0_10, %c0_11] : memref<1x96xf32, #tpu.memory_space<vmem>>, vector<1x96xf32>
    %16 = vector.broadcast %15 : vector<1x96xf32> to vector<16x96xf32>
    %17 = arith.addf %14, %16 : vector<16x96xf32>
    %18 = vector.extract_strided_slice %17 {offsets = [0, 0], sizes = [16, 32], strides = [1, 1]} : vector<16x96xf32> to vector<16x32xf32>
    %19 = arith.negf %18 : vector<16x32xf32>
    %20 = math.exp %19 : vector<16x32xf32>
    %cst_12 = arith.constant 1.000000e+00 : f32
    %21 = vector.broadcast %cst_12 : f32 to vector<16x32xf32>
    %22 = arith.addf %21, %20 : vector<16x32xf32>
    %23 = arith.divf %21, %22 : vector<16x32xf32>
    %24 = vector.extract_strided_slice %17 {offsets = [0, 32], sizes = [16, 32], strides = [1, 1]} : vector<16x96xf32> to vector<16x32xf32>
    %25 = arith.negf %24 : vector<16x32xf32>
    %26 = math.exp %25 : vector<16x32xf32>
    %cst_13 = arith.constant 1.000000e+00 : f32
    %27 = vector.broadcast %cst_13 : f32 to vector<16x32xf32>
    %28 = arith.addf %27, %26 : vector<16x32xf32>
    %29 = arith.divf %27, %28 : vector<16x32xf32>
    %30 = arith.mulf %29, %3 : vector<16x32xf32>
    %31 = arith.truncf %30 : vector<16x32xf32> to vector<16x32xbf16>
    %cst_14 = arith.constant dense<0.000000e+00> : vector<32x32xf32>
    %32 = tpu.matmul %6, %31, %cst_14 {dimension_numbers = #tpu.dot_dimension_numbers<[1], [0], [0], [1], [0, 0, 1, 1], [], []>} : vector<32x16xbf16>, vector<16x32xbf16>, vector<32x32xf32> -> vector<32x32xf32>
    %33 = vector.extract_strided_slice %32 {offsets = [0, 0], sizes = [16, 32], strides = [1, 1]} : vector<32x32xf32> to vector<16x32xf32>
    %34 = arith.truncf %33 : vector<16x32xf32> to vector<16x32xbf16>
    %35 = vector.extract_strided_slice %32 {offsets = [16, 0], sizes = [16, 32], strides = [1, 1]} : vector<32x32xf32> to vector<16x32xf32>
    %36 = arith.truncf %35 : vector<16x32xf32> to vector<16x32xbf16>
    %37 = tpu.concatenate %31, %34, %36 in 1 : vector<16x32xbf16>, vector<16x32xbf16>, vector<16x32xbf16> -> vector<16x96xbf16>
    %38 = vector.extract_strided_slice %17 {offsets = [0, 64], sizes = [16, 32], strides = [1, 1]} : vector<16x96xf32> to vector<16x32xf32>
    %c0_15 = arith.constant 0 : index
    %c0_16 = arith.constant 0 : index
    %39 = vector.load %arg5[%c0_15, %c0_16] : memref<96x32xbf16, #tpu.memory_space<vmem>>, vector<96x32xbf16>
    %cst_17 = arith.constant dense<0.000000e+00> : vector<16x32xf32>
    %40 = tpu.matmul %37, %39, %cst_17 {dimension_numbers = #tpu.dot_dimension_numbers<[1], [0], [0], [1], [0, 0, 1, 1], [], []>} : vector<16x96xbf16>, vector<96x32xbf16>, vector<16x32xf32> -> vector<16x32xf32>
    %41 = arith.addf %38, %40 : vector<16x32xf32>
    %42 = math.tanh %41 : vector<16x32xf32>
    %43 = arith.mulf %23, %3 : vector<16x32xf32>
    %cst_18 = arith.constant 1.000000e+00 : f32
    %44 = vector.broadcast %cst_18 : f32 to vector<16x32xf32>
    %45 = arith.subf %44, %23 : vector<16x32xf32>
    %46 = arith.mulf %45, %42 : vector<16x32xf32>
    %47 = arith.addf %43, %46 : vector<16x32xf32>
    %cst_19 = arith.constant dense<0.000000e+00> : vector<16xf32>
    %48 = vector.multi_reduction <add>, %47, %cst_19 [1] : vector<16x32xf32> to vector<16xf32>
    %49 = vector.shape_cast %48 : vector<16xf32> to vector<16x1xf32>
    %cst_20 = arith.constant 3.200000e+01 : f32
    %50 = vector.broadcast %cst_20 : f32 to vector<16x1xf32>
    %51 = arith.divf %49, %50 : vector<16x1xf32>
    %52 = vector.broadcast %51 : vector<16x1xf32> to vector<16x32xf32>
    %53 = arith.subf %47, %52 : vector<16x32xf32>
    %54 = arith.mulf %53, %53 : vector<16x32xf32>
    %cst_21 = arith.constant dense<0.000000e+00> : vector<16xf32>
    %55 = vector.multi_reduction <add>, %54, %cst_21 [1] : vector<16x32xf32> to vector<16xf32>
    %56 = vector.shape_cast %55 : vector<16xf32> to vector<16x1xf32>
    %cst_22 = arith.constant 3.200000e+01 : f32
    %57 = vector.broadcast %cst_22 : f32 to vector<16x1xf32>
    %58 = arith.divf %56, %57 : vector<16x1xf32>
    %59 = vector.broadcast %51 : vector<16x1xf32> to vector<16x32xf32>
    %60 = arith.subf %47, %59 : vector<16x32xf32>
    %cst_23 = arith.constant 9.99999974E-6 : f32
    %61 = vector.broadcast %cst_23 : f32 to vector<16x1xf32>
    %62 = arith.addf %58, %61 : vector<16x1xf32>
    %63 = math.rsqrt %62 : vector<16x1xf32>
    %64 = vector.broadcast %63 : vector<16x1xf32> to vector<16x32xf32>
    %65 = arith.mulf %60, %64 : vector<16x32xf32>
    %c0_24 = arith.constant 0 : index
    %c0_25 = arith.constant 0 : index
    %66 = vector.load %arg7[%c0_24, %c0_25] : memref<1x32xf32, #tpu.memory_space<vmem>>, vector<1x32xf32>
    %67 = vector.broadcast %66 : vector<1x32xf32> to vector<16x32xf32>
    %68 = arith.mulf %65, %67 : vector<16x32xf32>
    %c0_26 = arith.constant 0 : index
    %c0_27 = arith.constant 0 : index
    %69 = vector.load %arg8[%c0_26, %c0_27] : memref<1x32xf32, #tpu.memory_space<vmem>>, vector<1x32xf32>
    %70 = vector.broadcast %69 : vector<1x32xf32> to vector<16x32xf32>
    %71 = arith.addf %68, %70 : vector<16x32xf32>
    %c0_28 = arith.constant 0 : index
    %c0_29 = arith.constant 0 : index
    %c0_30 = arith.constant 0 : index
    %72 = vector.load %arg9[%c0_28, %c0_29, %c0_30] : memref<1x16x32xf32, #tpu.memory_space<vmem>>, vector<1x16x32xf32>
    %73 = vector.shape_cast %72 : vector<1x16x32xf32> to vector<16x32xf32>
    %74 = vector.shape_cast %71 : vector<16x32xf32> to vector<1x16x32xf32>
    tpu.vector_store %arg9[%c0_28, %c0_29, %c0_30], %74 {strides = array<i32>} : memref<1x16x32xf32, #tpu.memory_space<vmem>>, vector<1x16x32xf32>,
    return
  }
  func.func @transform_0(%arg0: i32) -> (i32, i32, i32) {
    %c0_i32 = arith.constant 0 : i32
    %c0_i32_0 = arith.constant 0 : i32
    %c0_i32_1 = arith.constant 0 : i32
    return %arg0, %c0_i32, %c0_i32_0 : i32, i32, i32
  }
  func.func @transform_1(%arg0: i32) -> (i32, i32, i32) {
    %c0_i32 = arith.constant 0 : i32
    %c0_i32_0 = arith.constant 0 : i32
    %c0_i32_1 = arith.constant 0 : i32
    return %arg0, %c0_i32, %c0_i32_0 : i32, i32, i32
  }
  func.func @transform_2(%arg0: i32) -> (i32, i32) {
    %c0_i32 = arith.constant 0 : i32
    %c0_i32_0 = arith.constant 0 : i32
    %c0_i32_1 = arith.constant 0 : i32
    return %c0_i32, %c0_i32_0 : i32, i32
  }
  func.func @transform_3(%arg0: i32) -> (i32, i32) {
    %c0_i32 = arith.constant 0 : i32
    %c0_i32_0 = arith.constant 0 : i32
    %c0_i32_1 = arith.constant 0 : i32
    return %c0_i32, %c0_i32_0 : i32, i32
  }
  func.func @transform_4(%arg0: i32) -> (i32, i32) {
    %c0_i32 = arith.constant 0 : i32
    %c0_i32_0 = arith.constant 0 : i32
    %c0_i32_1 = arith.constant 0 : i32
    return %c0_i32, %c0_i32_0 : i32, i32
  }
  func.func @transform_5(%arg0: i32) -> (i32, i32) {
    %c0_i32 = arith.constant 0 : i32
    %c0_i32_0 = arith.constant 0 : i32
    %c0_i32_1 = arith.constant 0 : i32
    return %c0_i32, %c0_i32_0 : i32, i32
  }
  func.func @transform_6(%arg0: i32) -> (i32, i32) {
    %c0_i32 = arith.constant 0 : i32
    %c0_i32_0 = arith.constant 0 : i32
    %c0_i32_1 = arith.constant 0 : i32
    return %c0_i32, %c0_i32_0 : i32, i32
  }
  func.func @transform_7(%arg0: i32) -> (i32, i32) {
    %c0_i32 = arith.constant 0 : i32
    %c0_i32_0 = arith.constant 0 : i32
    %c0_i32_1 = arith.constant 0 : i32
    return %c0_i32, %c0_i32_0 : i32, i32
  }
  func.func @transform_8(%arg0: i32) -> (i32, i32, i32) {
    %c0_i32 = arith.constant 0 : i32
    %c0_i32_0 = arith.constant 0 : i32
    %c0_i32_1 = arith.constant 0 : i32
    return %arg0, %c0_i32, %c0_i32_0 : i32, i32, i32
  }
}

</mosaic_0001>

<llo_original>
// kernel: tpu_custom_call.1
$region0: #{tpu_custom_call.1}
  #allocation0 [shape = 'u32[]', space=smem, size = 0x4, offset = 0x4, fixed_abs, tag = 'smem constant byte address 0x4 - core index']
  #allocation1 [shape = 'u32[72,128]{1,0:T(1,128)}', space=vmem, size = 0x9000, scoped, tag = 'internal scratch']
  %s0 = inlined_call_operand.vmem [shape: f32[2,16,4], index: 0, kind: input, shape index: {}]
  %s1 = inlined_call_operand.hbm [shape: f32[2,16,32], index: 1, kind: input, shape index: {}, may-alias: {1,8}]
  %s2 = inlined_call_operand.vmem [shape: bf16[32,16], index: 2, kind: input, shape index: {}]
  %s3 = inlined_call_operand.vmem [shape: bf16[108,96], index: 3, kind: input, shape index: {}]
  %s4 = inlined_call_operand.vmem [shape: bf16[96,32], index: 4, kind: input, shape index: {}]
  %s5 = inlined_call_operand.vmem [shape: f32[1,96], index: 5, kind: input, shape index: {}]
  %s6 = inlined_call_operand.vmem [shape: f32[1,32], index: 6, kind: input, shape index: {}]
  %s7 = inlined_call_operand.vmem [shape: f32[1,32], index: 7, kind: input, shape index: {}]
  %s8 = inlined_call_operand.hbm [shape: f32[2,16,32], index: 8, kind: output, shape index: {}, may-alias: {1,8}]
  %s9 = sld [smem:[#allocation0]]
  $region69: #{tpu_custom_call.1} parent=0
    _
  %s11 = ssub.s32 1, %s9
  %s12 = scalar_select 0, %s11, %s9
  $region1: #{tpu_custom_call.1} parent=0
    #allocation2 [shape = 'u8[16384]{0}', space=vmem, size = 0x4000, scoped, tag = 'input window, operand 1']
    #allocation3 [shape = 's32[2]{0}', space=sflag, size = 0x8, scoped, tag = 'scoped memory for tpu_custom_call.1']
    #allocation4 [shape = 's32[2]{0}', space=sflag, size = 0x8, scoped, tag = 'scoped memory for tpu_custom_call.1']
    #allocation5 [shape = 'u8[16384]{0}', space=vmem, size = 0x4000, scoped, tag = 'output window, operand 0']
    %13 = vsyncpa [#allocation3], 0
    %s14 = scalar_lea.sflag [#allocation3], 1
    %15 = vsyncpa %s14, 0
    %16 = vsyncpa [#allocation4], 0
    %s17 = scalar_lea.sflag [#allocation4], 1
    %18 = vsyncpa %s17, 0
    loop: start=0, step=1, limit=4
    $region2: #{tpu_custom_call.1} parent=1 // loop_pre_header
      _
    $region3: #{tpu_custom_call.1} parent=1 // loop_header
      %s20 = sphi 0, %s24
      %p21 = scmp.ge.s32.totalorder %s20, 4
      %s30 = sphi 0, %s32
      %s33 = sphi 0, %s30
      %s34 = sphi 0, %s33
      %s50 = sphi 0, %s34
      %s56 = sphi 0, %s58
      %s59 = sphi 0, %s56
      %s60 = sphi 0, %s59
      %s76 = sphi 0, %s60
      %s80 = sphi 0, %s80
      %s82 = sphi 0, %s80
      %s83 = sphi 0, %s82
      %s97 = sphi 0, %s83
      %s101 = sphi 0, %s101
      %s103 = sphi 0, %s101
      %s104 = sphi 0, %s103
      %s118 = sphi 0, %s104
      %s122 = sphi 0, %s122
      %s124 = sphi 0, %s122
      %s125 = sphi 0, %s124
      %s139 = sphi 0, %s125
      %s143 = sphi 0, %s143
      %s145 = sphi 0, %s143
      %s146 = sphi 0, %s145
      %s160 = sphi 0, %s146
      %s164 = sphi 0, %s164
      %s166 = sphi 0, %s164
      %s167 = sphi 0, %s166
      %s181 = sphi 0, %s167
      %s185 = sphi 0, %s185
      %s187 = sphi 0, %s185
      %s188 = sphi 0, %s187
      %s202 = sphi 0, %s188
      %s208 = sphi 0, %s210
      %s211 = sphi 0, %s208
      %s212 = sphi 0, %s211
      %s228 = sphi 0, %s212
    $region4: #{tpu_custom_call.1} parent=1 // loop_header_branch
      %23 = sbr.rel (%p21) target = $region8
    $region5: #{tpu_custom_call.1} parent=1 // loop_body
      %s25 = ssub.s32 %s20, 1
      %s26 = ssub.s32 %s20, 2
      %s27 = sadd.s32 %s20, 1
      %s28 = ssub.s32 %s20, %s27
      %p29 = scmp.eq.s32.totalorder %s28, 0
      %s31 = sadd.s32 %s30, 1
      %s32 = scalar_select %p29, %s30, %s31
      %p35 = pneg %p29
      %p36 = scmp.eq.s32.totalorder %s20, 1
      %p37 = por %p35, %p36
      %p38 = scmp.ne.s32.totalorder %s30, %s33
      %p39 = scmp.eq.s32.totalorder %s20, 0
      %p40 = por %p38, %p39
      %p41 = scmp.ne.s32.totalorder %s30, %s33
      %p42 = scmp.eq.s32.totalorder %s25, 1
      %p43 = por %p41, %p42
      %p44 = scmp.ne.s32.totalorder %s33, %s34
      %p45 = scmp.eq.s32.totalorder %s25, 0
      %p46 = por %p44, %p45
      %p47 = scmp.ne.s32.totalorder %s33, %s34
      %p48 = scmp.eq.s32.totalorder %s26, 1
      %p49 = por %p47, %p48
      %p51 = scmp.ne.s32.totalorder %s34, %s50
      %p52 = scmp.eq.s32.totalorder %s26, 0
      %p53 = por %p51, %p52
      %s54 = ssub.s32 %s20, %s27
      %p55 = scmp.eq.s32.totalorder %s54, 0
      %s57 = sadd.s32 %s56, 1
      %s58 = scalar_select %p55, %s56, %s57
      %p61 = pneg %p55
      %p62 = scmp.eq.s32.totalorder %s20, 1
      %p63 = por %p61, %p62
      %p64 = scmp.ne.s32.totalorder %s56, %s59
      %p65 = scmp.eq.s32.totalorder %s20, 0
      %p66 = por %p64, %p65
      %p67 = scmp.ne.s32.totalorder %s56, %s59
      %p68 = scmp.eq.s32.totalorder %s25, 1
      %p69 = por %p67, %p68
      %p70 = scmp.ne.s32.totalorder %s59, %s60
      %p71 = scmp.eq.s32.totalorder %s25, 0
      %p72 = por %p70, %p71
      %p73 = scmp.ne.s32.totalorder %s59, %s60
      %p74 = scmp.eq.s32.totalorder %s26, 1
      %p75 = por %p73, %p74
      %p77 = scmp.ne.s32.totalorder %s60, %s76
      %p78 = scmp.eq.s32.totalorder %s26, 0
      %p79 = por %p77, %p78
      %s81 = sadd.s32 %s80, 1
      %p84 = scmp.eq.s32.totalorder %s20, 1
      %p85 = scmp.ne.s32.totalorder %s80, %s82
      %p86 = scmp.eq.s32.totalorder %s20, 0
      %p87 = por %p85, %p86
      %p88 = scmp.ne.s32.totalorder %s80, %s82
      %p89 = scmp.eq.s32.totalorder %s25, 1
      %p90 = por %p88, %p89
      %p91 = scmp.ne.s32.totalorder %s82, %s83
      %p92 = scmp.eq.s32.totalorder %s25, 0
      %p93 = por %p91, %p92
      %p94 = scmp.ne.s32.totalorder %s82, %s83
      %p95 = scmp.eq.s32.totalorder %s26, 1
      %p96 = por %p94, %p95
      %p98 = scmp.ne.s32.totalorder %s83, %s97
      %p99 = scmp.eq.s32.totalorder %s26, 0
      %p100 = por %p98, %p99
      %s102 = sadd.s32 %s101, 1
      %p105 = scmp.eq.s32.totalorder %s20, 1
      %p106 = scmp.ne.s32.totalorder %s101, %s103
      %p107 = scmp.eq.s32.totalorder %s20, 0
      %p108 = por %p106, %p107
      %p109 = scmp.ne.s32.totalorder %s101, %s103
      %p110 = scmp.eq.s32.totalorder %s25, 1
      %p111 = por %p109, %p110
      %p112 = scmp.ne.s32.totalorder %s103, %s104
      %p113 = scmp.eq.s32.totalorder %s25, 0
      %p114 = por %p112, %p113
      %p115 = scmp.ne.s32.totalorder %s103, %s104
      %p116 = scmp.eq.s32.totalorder %s26, 1
      %p117 = por %p115, %p116
      %p119 = scmp.ne.s32.totalorder %s104, %s118
      %p120 = scmp.eq.s32.totalorder %s26, 0
      %p121 = por %p119, %p120
      %s123 = sadd.s32 %s122, 1
      %p126 = scmp.eq.s32.totalorder %s20, 1
      %p127 = scmp.ne.s32.totalorder %s122, %s124
      %p128 = scmp.eq.s32.totalorder %s20, 0
      %p129 = por %p127, %p128
      %p130 = scmp.ne.s32.totalorder %s122, %s124
      %p131 = scmp.eq.s32.totalorder %s25, 1
      %p132 = por %p130, %p131
      %p133 = scmp.ne.s32.totalorder %s124, %s125
      %p134 = scmp.eq.s32.totalorder %s25, 0
      %p135 = por %p133, %p134
      %p136 = scmp.ne.s32.totalorder %s124, %s125
      %p137 = scmp.eq.s32.totalorder %s26, 1
      %p138 = por %p136, %p137
      %p140 = scmp.ne.s32.totalorder %s125, %s139
      %p141 = scmp.eq.s32.totalorder %s26, 0
      %p142 = por %p140, %p141
      %s144 = sadd.s32 %s143, 1
      %p147 = scmp.eq.s32.totalorder %s20, 1
      %p148 = scmp.ne.s32.totalorder %s143, %s145
      %p149 = scmp.eq.s32.totalorder %s20, 0
      %p150 = por %p148, %p149
      %p151 = scmp.ne.s32.totalorder %s143, %s145
      %p152 = scmp.eq.s32.totalorder %s25, 1
      %p153 = por %p151, %p152
      %p154 = scmp.ne.s32.totalorder %s145, %s146
      %p155 = scmp.eq.s32.totalorder %s25, 0
      %p156 = por %p154, %p155
      %p157 = scmp.ne.s32.totalorder %s145, %s146
      %p158 = scmp.eq.s32.totalorder %s26, 1
      %p159 = por %p157, %p158
      %p161 = scmp.ne.s32.totalorder %s146, %s160
      %p162 = scmp.eq.s32.totalorder %s26, 0
      %p163 = por %p161, %p162
      %s165 = sadd.s32 %s164, 1
      %p168 = scmp.eq.s32.totalorder %s20, 1
      %p169 = scmp.ne.s32.totalorder %s164, %s166
      %p170 = scmp.eq.s32.totalorder %s20, 0
      %p171 = por %p169, %p170
      %p172 = scmp.ne.s32.totalorder %s164, %s166
      %p173 = scmp.eq.s32.totalorder %s25, 1
      %p174 = por %p172, %p173
      %p175 = scmp.ne.s32.totalorder %s166, %s167
      %p176 = scmp.eq.s32.totalorder %s25, 0
      %p177 = por %p175, %p176
      %p178 = scmp.ne.s32.totalorder %s166, %s167
      %p179 = scmp.eq.s32.totalorder %s26, 1
      %p180 = por %p178, %p179
      %p182 = scmp.ne.s32.totalorder %s167, %s181
      %p183 = scmp.eq.s32.totalorder %s26, 0
      %p184 = por %p182, %p183
      %s186 = sadd.s32 %s185, 1
      %p189 = scmp.eq.s32.totalorder %s20, 1
      %p190 = scmp.ne.s32.totalorder %s185, %s187
      %p191 = scmp.eq.s32.totalorder %s20, 0
      %p192 = por %p190, %p191
      %p193 = scmp.ne.s32.totalorder %s185, %s187
      %p194 = scmp.eq.s32.totalorder %s25, 1
      %p195 = por %p193, %p194
      %p196 = scmp.ne.s32.totalorder %s187, %s188
      %p197 = scmp.eq.s32.totalorder %s25, 0
      %p198 = por %p196, %p197
      %p199 = scmp.ne.s32.totalorder %s187, %s188
      %p200 = scmp.eq.s32.totalorder %s26, 1
      %p201 = por %p199, %p200
      %p203 = scmp.ne.s32.totalorder %s188, %s202
      %p204 = scmp.eq.s32.totalorder %s26, 0
      %p205 = por %p203, %p204
      %s206 = ssub.s32 %s20, %s27
      %p207 = scmp.eq.s32.totalorder %s206, 0
      %s209 = sadd.s32 %s208, 1
      %s210 = scalar_select %p207, %s208, %s209
      %p213 = pneg %p207
      %p214 = scmp.eq.s32.totalorder %s20, 1
      %p215 = por %p213, %p214
      %p216 = scmp.ne.s32.totalorder %s208, %s211
      %p217 = scmp.eq.s32.totalorder %s20, 0
      %p218 = por %p216, %p217
      %p219 = scmp.ne.s32.totalorder %s208, %s211
      %p220 = scmp.eq.s32.totalorder %s25, 1
      %p221 = por %p219, %p220
      %p222 = scmp.ne.s32.totalorder %s211, %s212
      %p223 = scmp.eq.s32.totalorder %s25, 0
      %p224 = por %p222, %p223
      %p225 = scmp.ne.s32.totalorder %s211, %s212
      %p226 = scmp.eq.s32.totalorder %s26, 1
      %p227 = por %p225, %p226
      %p229 = scmp.ne.s32.totalorder %s212, %s228
      %p230 = scmp.eq.s32.totalorder %s26, 0
      %p231 = por %p229, %p230
      %p232 = scmp.le.s32.totalorder 1, %s20
      %p233 = scmp.lt.s32.totalorder %s20, 3
      %p234 = pnand %p232, %p233
      %p235 = pneg %p234
      // Predicated region
      $region9: #{tpu_custom_call.1} parent=5 // pred_check
        _
      $region10: #{tpu_custom_call.1} parent=5 // pred_check_branch
        %237 = sbr.rel (%p234) target = $region12
      $region11: #{tpu_custom_call.1} parent=5 // pred_region
        %s238 = ssub.s32 %s20, 1
        // Predicated region
        $region13: #{tpu_custom_call.1} parent=11 // pred_check
          %p239 = pneg %p93
        $region14: #{tpu_custom_call.1} parent=11 // pred_check_branch
          %241 = sbr.rel (%p239) target = $region16
        $region15: #{tpu_custom_call.1} parent=11 // pred_region
          _
        $region16: #{tpu_custom_call.1} parent=11 // pred_fallthru
          _
        // Predicated region
        $region17: #{tpu_custom_call.1} parent=11 // pred_check
          %p242 = pneg %p114
        $region18: #{tpu_custom_call.1} parent=11 // pred_check_branch
          %244 = sbr.rel (%p242) target = $region20
        $region19: #{tpu_custom_call.1} parent=11 // pred_region
          _
        $region20: #{tpu_custom_call.1} parent=11 // pred_fallthru
          _
        // Predicated region
        $region21: #{tpu_custom_call.1} parent=11 // pred_check
          %p245 = pneg %p135
        $region22: #{tpu_custom_call.1} parent=11 // pred_check_branch
          %247 = sbr.rel (%p245) target = $region24
        $region23: #{tpu_custom_call.1} parent=11 // pred_region
          _
        $region24: #{tpu_custom_call.1} parent=11 // pred_fallthru
          _
        // Predicated region
        $region25: #{tpu_custom_call.1} parent=11 // pred_check
          %p248 = pneg %p156
        $region26: #{tpu_custom_call.1} parent=11 // pred_check_branch
          %250 = sbr.rel (%p248) target = $region28
        $region27: #{tpu_custom_call.1} parent=11 // pred_region
          _
        $region28: #{tpu_custom_call.1} parent=11 // pred_fallthru
          _
        // Predicated region
        $region29: #{tpu_custom_call.1} parent=11 // pred_check
          %p251 = pneg %p177
        $region30: #{tpu_custom_call.1} parent=11 // pred_check_branch
          %253 = sbr.rel (%p251) target = $region32
        $region31: #{tpu_custom_call.1} parent=11 // pred_region
          _
        $region32: #{tpu_custom_call.1} parent=11 // pred_fallthru
          _
        // Predicated region
        $region33: #{tpu_custom_call.1} parent=11 // pred_check
          %p254 = pneg %p198
        $region34: #{tpu_custom_call.1} parent=11 // pred_check_branch
          %256 = sbr.rel (%p254) target = $region36
        $region35: #{tpu_custom_call.1} parent=11 // pred_region
          _
        $region36: #{tpu_custom_call.1} parent=11 // pred_fallthru
          _
      $region12: #{tpu_custom_call.1} parent=5 // pred_fallthru
        _
      %p257 = scmp.lt.s32.totalorder %s20, 2
      // Predicated region
      $region37: #{tpu_custom_call.1} parent=5 // pred_check
        %p258 = pneg %p257
      $region38: #{tpu_custom_call.1} parent=5 // pred_check_branch
        %260 = sbr.rel (%p258) target = $region40
      $region39: #{tpu_custom_call.1} parent=5 // pred_region
        // Predicated region
        $region41: #{tpu_custom_call.1} parent=39 // pred_check
          %p261 = pneg %p40
        $region42: #{tpu_custom_call.1} parent=39 // pred_check_branch
          %263 = sbr.rel (%p261) target = $region44
        $region43: #{tpu_custom_call.1} parent=39 // pred_region
          %p264 = scmp.lt.s32.totalorder %s20, 1
          %s265 = scalar_select %p264, %s20, 1
          %s266 = smul.addr %s265, 2
          %s267 = smul.addr %s266, 8
          %s268 = scalar_lea.vmem %s0, %s267
        $region44: #{tpu_custom_call.1} parent=39 // pred_fallthru
          _
        // Predicated region
        $region45: #{tpu_custom_call.1} parent=39 // pred_check
          %p269 = pneg %p66
        $region46: #{tpu_custom_call.1} parent=39 // pred_check_branch
          %271 = sbr.rel (%p269) target = $region48
        $region47: #{tpu_custom_call.1} parent=39 // pred_region
          %s272 = sand.u32 %s56, 1
          %s273 = scalar_lea.sflag [#allocation3], %s272
          %s274 = sand.u32 %s56, 1
          %s275 = smul.addr %s274, 16
          %s276 = scalar_lea.vmem [#allocation2], %s275
          %278 = vsyncadd %s273, 0
          %s279 = smul.addr %s20, 2
          %s280 = smul.addr %s279, 8
          %s281 = scalar_lea.hbm %s1, %s280
          %s282 = sshll.u32 %s281, 4
          %s283 = int_to_ptr.hbm [resolvable:$true] %s282
          %s284 = sshll.u32 %s276, 4
          %s285 = int_to_ptr.vmem [resolvable:$true] %s284
          %290 = dma.hbm_to_vmem [thread:$0]  %s283, 256, %s285, %s273, 128, 128, 8
        $region48: #{tpu_custom_call.1} parent=39 // pred_fallthru
          _
      $region40: #{tpu_custom_call.1} parent=5 // pred_fallthru
        _
      %p291 = scmp.le.s32.totalorder 1, %s20
      %p292 = scmp.lt.s32.totalorder %s20, 3
      %p293 = pnand %p291, %p292
      %p294 = pneg %p293
      // Predicated region
      $region49: #{tpu_custom_call.1} parent=5 // pred_check
        _
      $region50: #{tpu_custom_call.1} parent=5 // pred_check_branch
        %296 = sbr.rel (%p293) target = $region52
      $region51: #{tpu_custom_call.1} parent=5 // pred_region
        %s297 = ssub.s32 %s20, 1
        %s298 = sand.u32 %s59, 1
        %s299 = scalar_lea.sflag [#allocation3], %s298
        %s300 = sand.u32 %s59, 1
        %s301 = smul.addr %s300, 16
        %s302 = scalar_lea.vmem [#allocation2], %s301
        // Predicated region
        $region53: #{tpu_custom_call.1} parent=51 // pred_check
          %p303 = pneg %p72
        $region54: #{tpu_custom_call.1} parent=51 // pred_check_branch
          %305 = sbr.rel (%p303) target = $region56
        $region55: #{tpu_custom_call.1} parent=51 // pred_region
          %307 = dma.done %s299, 256
        $region56: #{tpu_custom_call.1} parent=51 // pred_fallthru
          _
        %p308 = scmp.lt.s32.totalorder %s25, 1
        %s309 = scalar_select %p308, %s25, 1
        %s310 = smul.addr %s309, 2
        %s311 = smul.addr %s310, 8
        %s312 = scalar_lea.vmem %s0, %s311
        %p313 = pneg %p46
        %p314 = pneg %p43
        %s315 = sand.u32 %s59, 1
        %s316 = scalar_lea.sflag [#allocation3], %s315
        %s317 = sand.u32 %s59, 1
        %s318 = smul.addr %s317, 16
        %s319 = scalar_lea.vmem [#allocation2], %s318
        %p320 = pneg %p72
        %p321 = pneg %p69
        %p322 = pneg %p93
        %p323 = pneg %p90
        %p324 = pneg %p114
        %p325 = pneg %p111
        %p326 = pneg %p135
        %p327 = pneg %p132
        %p328 = pneg %p156
        %p329 = pneg %p153
        %p330 = pneg %p177
        %p331 = pneg %p174
        %p332 = pneg %p198
        %p333 = pneg %p195
        %p334 = pneg %p224
        %p335 = pneg %p221
        %s336 = sand.u32 %s211, 1
        %s337 = scalar_lea.sflag [#allocation4], %s336
        %s338 = sand.u32 %s211, 1
        %s339 = smul.addr %s338, 16
        %s340 = scalar_lea.vmem [#allocation5], %s339
        %p341 = scmp.lt.s32.totalorder %s25, 1
        %s342 = scalar_select %p341, %s25, 1
        %s343 = smul.addr %s342, 2
        %s344 = smul.addr %s343, 8
        %s345 = scalar_lea.vmem %s0, %s344
        %v347 = vld [vmem:[%s345] sm:$0xff]
        %v348 = vld [vmem:[%s345 + $0x8] sm:$0xff]
        %v349 = vld [vmem:[%s302] sm:$0xff]
        %v350 = vld [vmem:[%s302 + $0x8] sm:$0xff]
        %353 = vrot.lane.b32.xlu0 %v349, 4
        %v354 = vpop.permute.xlu0 %353
        %355 = vrot.lane.b32.xlu0 %v350, 4
        %v356 = vpop.permute.xlu0 %355
        %vm359 = vcmask 31744
        %v360 = vsel %vm359, %v347, %v354
        %v361 = vsel %vm359, %v348, %v356
        %v362 = vpack.c.bf16 %v360, %v360
        %v363 = vpack.c.bf16 %v361, %v361
        %v364 = vld [vmem:[%s2] sm:$0xf]
        %v365 = vld [vmem:[%s2 + $0x4] sm:$0xf]
        %v366 = vld [vmem:[%s2 + $0x8] sm:$0xf]
        %v367 = vld [vmem:[%s2 + $0xc] sm:$0xf]
        %v372 = vunpack.c.l.b16 %v364
        %v373 = vunpack.c.l.b16 %v365
        %v374 = vunpack.c.l.b16 %v366
        %v375 = vunpack.c.l.b16 %v367
        %v376 = vpack.c.b16 %v373, %v372
        %v377 = vpack.c.b16 %v375, %v374
        %v380 = vunpack.c.l.b16 %v362
        %v381 = vunpack.c.l.b16 %v363
        %v382 = vpack.c.b16 %v381, %v380
        %vm384 = vcmask 130048
        %v386 = vsel %vm384, %v376, 0
        %v389 = vsel %vm384, %v377, 0
        %391 = vmatpush.bf16.msra.mxu0 0
        %392 = vmatpush.bf16.msra.mxu0 0
        %393 = vmatpush.bf16.msra.mxu0 0
        %394 = vmatpush.bf16.msra.mxu0 0
        %395 = vmatpush.bf16.msra.mxu0 0
        %396 = vmatpush.bf16.msra.mxu0 0
        %397 = vmatpush.bf16.msra.mxu0 0
        %398 = vmatpush.bf16.msra.mxu0 %v382
        %399 = vmatmul.bf16.gmra.mxu0 %v386
        %v400 = vpop.f32.mrf.mxu0
        %v401 = vadd.f32 0.0, %v400
        %v402 = vpop.f32.mrf.mxu0
        %v403 = vadd.f32 0.0, %v402
        %404 = vmatmul.bf16.gmra.mxu0 %v389
        %v405 = vpop.f32.mrf.mxu0
        %v406 = vadd.f32 0.0, %v405
        %v407 = vpop.f32.mrf.mxu0
        %v408 = vadd.f32 0.0, %v407
        %409 = vdwg.mxu0
        %v410 = vpack.c.bf16 %v401, %v401
        %v411 = vpack.c.bf16 %v403, %v403
        %v412 = vpack.c.bf16 %v406, %v406
        %v413 = vpack.c.bf16 %v408, %v408
        %v416 = vunpack.c.l.b16 %v410
        %v417 = vunpack.c.l.b16 %v411
        %v418 = vpack.c.b16 %v417, %v416
        %419 = vrot.lane.b32.xlu0 %v418, 36
        %v420 = vpop.permute.xlu0 %419
        %v423 = vunpack.c.l.b16 %v412
        %v424 = vunpack.c.l.b16 %v413
        %v425 = vpack.c.b16 %v424, %v423
        %426 = vrot.lane.b32.xlu0 %v425, 72
        %v427 = vpop.permute.xlu0 %426
        %vm428 = vcmask 293888
        %v431 = vsel %vm428, %v382, %v420
        %vm432 = vcmask 588800
        %v434 = vsel %vm432, %v431, %v427
        %v435 = vld [vmem:[%s3] sm:$0xf]
        %v436 = vld [vmem:[%s3 + $0x4] sm:$0xf]
        %v437 = vld [vmem:[%s3 + $0x8] sm:$0xf]
        %v438 = vld [vmem:[%s3 + $0xc] sm:$0xf]
        %v439 = vld [vmem:[%s3 + $0x10] sm:$0xf]
        %v440 = vld [vmem:[%s3 + $0x14] sm:$0xf]
        %v441 = vld [vmem:[%s3 + $0x18] sm:$0xf]
        %v442 = vld [vmem:[%s3 + $0x1c] sm:$0xf]
        %v443 = vld [vmem:[%s3 + $0x20] sm:$0xf]
        %v444 = vld [vmem:[%s3 + $0x24] sm:$0xf]
        %v445 = vld [vmem:[%s3 + $0x28] sm:$0xf]
        %v446 = vld [vmem:[%s3 + $0x2c] sm:$0xf]
        %v447 = vld [vmem:[%s3 + $0x30] sm:$0xf]
        %v448 = vld [vmem:[%s3 + $0x34] sm:$0x3]
        %v449 = vld [vmem:[%s5] sm:$0x1]
        %v451 = vperm.slane %v449, 0
        %v467 = vunpack.c.l.b16 %v435
        %v468 = vunpack.c.l.b16 %v436
        %v469 = vunpack.c.l.b16 %v437
        %v470 = vunpack.c.l.b16 %v438
        %v471 = vunpack.c.l.b16 %v439
        %v472 = vunpack.c.l.b16 %v440
        %v473 = vunpack.c.l.b16 %v441
        %v474 = vunpack.c.l.b16 %v442
        %v475 = vunpack.c.l.b16 %v443
        %v476 = vunpack.c.l.b16 %v444
        %v477 = vunpack.c.l.b16 %v445
        %v478 = vunpack.c.l.b16 %v446
        %v479 = vunpack.c.l.b16 %v447
        %v480 = vunpack.c.l.b16 %v448
        %v481 = vpack.c.b16 %v468, %v467
        %v482 = vpack.c.b16 %v470, %v469
        %v483 = vpack.c.b16 %v472, %v471
        %v484 = vpack.c.b16 %v474, %v473
        %v485 = vpack.c.b16 %v476, %v475
        %v486 = vpack.c.b16 %v478, %v477
        %v487 = vpack.c.b16 %v480, %v479
        %vm494 = vcmask 883712
        %v495 = vsel %vm494, %v434, 0
        %vm497 = vcmask 1045504
        %v499 = vsel %vm497, %v487, 0
        %501 = vmatpush.bf16.msra.mxu0 0
        %502 = vmatpush.bf16.msra.mxu0 %v499
        %503 = vmatpush.bf16.msra.mxu0 %v486
        %504 = vmatpush.bf16.msra.mxu0 %v485
        %505 = vmatpush.bf16.msra.mxu0 %v484
        %506 = vmatpush.bf16.msra.mxu0 %v483
        %507 = vmatpush.bf16.msra.mxu0 %v482
        %508 = vmatpush.bf16.msra.mxu0 %v481
        %509 = vmatmul.bf16.gmra.mxu0 %v495
        %v510 = vpop.f32.mrf.mxu0
        %v511 = vadd.f32 %v451, %v510
        %v512 = vpop.f32.mrf.mxu0
        %v513 = vadd.f32 %v451, %v512
        %514 = vdwg.mxu0
        %v515 = vxor.u32 %v511, 2147483648
        %v516 = vxor.u32 %v513, 2147483648
        %v517 = vmul.f32 %v515, 1.442695
        %v518 = vpow.pop %v517
        %v519 = vmul.f32 %v516, 1.442695
        %v520 = vpow.pop %v519
        %v521 = vadd.f32 %v518, 1.0
        %v522 = vadd.f32 %v520, 1.0
        %v523 = vrcp.pop %v521
        %v524 = vmul.f32 %v521, %v523
        %v525 = vsub.f32 1.0, %v524
        %v526 = vmul.f32 %v523, %v525
        %v527 = vadd.f32 %v523, %v526
        %vm528 = vweird.f32 %v521
        %vm529 = vweird.f32 %v523
        %vm530 = vmor %vm528, %vm529
        %v531 = vsel %vm530, %v523, %v527
        %v532 = vand.u32 2147483647, %v521
        %vm533 = vcmp.eq.f32.partialorder %v532, 8.507059e+37
        %v534 = vand.u32 %v521, 2147483648
        %v535 = vor.u32 1.1754944e-38, %v534
        %v536 = vsel %vm533, %v535, %v531
        %v537 = vmul.f32 1.0, %v536
        %v538 = vrcp.pop %v522
        %v539 = vmul.f32 %v522, %v538
        %v540 = vsub.f32 1.0, %v539
        %v541 = vmul.f32 %v538, %v540
        %v542 = vadd.f32 %v538, %v541
        %vm543 = vweird.f32 %v522
        %vm544 = vweird.f32 %v538
        %vm545 = vmor %vm543, %vm544
        %v546 = vsel %vm545, %v538, %v542
        %v547 = vand.u32 2147483647, %v522
        %vm548 = vcmp.eq.f32.partialorder %v547, 8.507059e+37
        %v549 = vand.u32 %v522, 2147483648
        %v550 = vor.u32 1.1754944e-38, %v549
        %v551 = vsel %vm548, %v550, %v546
        %v552 = vmul.f32 1.0, %v551
        %553 = vrot.lane.b32.xlu0 %v349, 32
        %v554 = vpop.permute.xlu0 %553
        %555 = vrot.lane.b32.xlu0 %v350, 32
        %v556 = vpop.permute.xlu0 %555
        %v559 = vmul.f32 %v537, %v554
        %v560 = vmul.f32 %v552, %v556
        %v561 = vpack.c.bf16 %v559, %v559
        %v562 = vpack.c.bf16 %v560, %v560
        %v565 = vunpack.c.l.b16 %v561
        %v566 = vunpack.c.l.b16 %v562
        %v567 = vpack.c.b16 %v566, %v565
        %568 = vrot.lane.b32.xlu0 %v567, 96
        %v569 = vpop.permute.xlu0 %568
        %571 = vmatpush.bf16.msra.mxu0 0
        %572 = vmatpush.bf16.msra.mxu0 0
        %573 = vmatpush.bf16.msra.mxu0 0
        %574 = vmatpush.bf16.msra.mxu0 0
        %575 = vmatpush.bf16.msra.mxu0 0
        %576 = vmatpush.bf16.msra.mxu0 0
        %577 = vmatpush.bf16.msra.mxu0 0
        %578 = vmatpush.bf16.msra.mxu0 %v569
        %579 = vmatmul.bf16.gmra.mxu0 %v386
        %v580 = vpop.f32.mrf.mxu0
        %v581 = vadd.f32 0.0, %v580
        %v582 = vpop.f32.mrf.mxu0
        %v583 = vadd.f32 0.0, %v582
        %584 = vmatmul.bf16.gmra.mxu0 %v389
        %v585 = vpop.f32.mrf.mxu0
        %v586 = vadd.f32 0.0, %v585
        %v587 = vpop.f32.mrf.mxu0
        %v588 = vadd.f32 0.0, %v587
        %589 = vdwg.mxu0
        %v590 = vpack.c.bf16 %v581, %v581
        %v591 = vpack.c.bf16 %v583, %v583
        %v592 = vpack.c.bf16 %v586, %v586
        %v593 = vpack.c.bf16 %v588, %v588
        %v596 = vunpack.c.l.b16 %v590
        %v597 = vunpack.c.l.b16 %v591
        %v598 = vpack.c.b16 %v597, %v596
        %599 = vrot.lane.b32.xlu0 %v598, 32
        %v600 = vpop.permute.xlu0 %599
        %v603 = vunpack.c.l.b16 %v592
        %v604 = vunpack.c.l.b16 %v593
        %v605 = vpack.c.b16 %v604, %v603
        %606 = vrot.lane.b32.xlu0 %v605, 64
        %v607 = vpop.permute.xlu0 %606
        %vm608 = vcmask 261120
        %v611 = vsel %vm608, %v569, %v600
        %vm612 = vcmask 523264
        %v614 = vsel %vm612, %v611, %v607
        %v615 = vld [vmem:[%s4] sm:$0xf]
        %v616 = vld [vmem:[%s4 + $0x4] sm:$0xf]
        %v617 = vld [vmem:[%s4 + $0x8] sm:$0xf]
        %v618 = vld [vmem:[%s4 + $0xc] sm:$0xf]
        %v619 = vld [vmem:[%s4 + $0x10] sm:$0xf]
        %v620 = vld [vmem:[%s4 + $0x14] sm:$0xf]
        %v621 = vld [vmem:[%s4 + $0x18] sm:$0xf]
        %v622 = vld [vmem:[%s4 + $0x1c] sm:$0xf]
        %v623 = vld [vmem:[%s4 + $0x20] sm:$0xf]
        %v624 = vld [vmem:[%s4 + $0x24] sm:$0xf]
        %v625 = vld [vmem:[%s4 + $0x28] sm:$0xf]
        %v626 = vld [vmem:[%s4 + $0x2c] sm:$0xf]
        %v639 = vunpack.c.l.b16 %v615
        %v640 = vunpack.c.l.b16 %v616
        %v641 = vunpack.c.l.b16 %v617
        %v642 = vunpack.c.l.b16 %v618
        %v643 = vunpack.c.l.b16 %v619
        %v644 = vunpack.c.l.b16 %v620
        %v645 = vunpack.c.l.b16 %v621
        %v646 = vunpack.c.l.b16 %v622
        %v647 = vunpack.c.l.b16 %v623
        %v648 = vunpack.c.l.b16 %v624
        %v649 = vunpack.c.l.b16 %v625
        %v650 = vunpack.c.l.b16 %v626
        %v651 = vpack.c.b16 %v640, %v639
        %v652 = vpack.c.b16 %v642, %v641
        %v653 = vpack.c.b16 %v644, %v643
        %v654 = vpack.c.b16 %v646, %v645
        %v655 = vpack.c.b16 %v648, %v647
        %v656 = vpack.c.b16 %v650, %v649
        %vm663 = vcmask 785408
        %v664 = vsel %vm663, %v614, 0
        %666 = vmatpush.bf16.msra.mxu0 0
        %667 = vmatpush.bf16.msra.mxu0 0
        %668 = vmatpush.bf16.msra.mxu0 %v656
        %669 = vmatpush.bf16.msra.mxu0 %v655
        %670 = vmatpush.bf16.msra.mxu0 %v654
        %671 = vmatpush.bf16.msra.mxu0 %v653
        %672 = vmatpush.bf16.msra.mxu0 %v652
        %673 = vmatpush.bf16.msra.mxu0 %v651
        %674 = vmatmul.bf16.gmra.mxu0 %v664
        %v675 = vpop.f32.mrf.mxu0
        %v676 = vadd.f32 0.0, %v675
        %v677 = vpop.f32.mrf.mxu0
        %v678 = vadd.f32 0.0, %v677
        %679 = vdwg.mxu0
        %682 = vrot.lane.b32.xlu0 %v676, 64
        %v683 = vpop.permute.xlu0 %682
        %684 = vrot.lane.b32.xlu0 %v678, 64
        %v685 = vpop.permute.xlu0 %684
        %v688 = vadd.f32 %v511, %v683
        %v689 = vadd.f32 %v513, %v685
        %v690 = vtanh.pop %v688
        %v691 = vtanh.pop %v689
        %v692 = vmul.f32 %v537, %v349
        %v693 = vmul.f32 %v552, %v350
        %v694 = vsub.f32 1.0, %v537
        %v695 = vsub.f32 1.0, %v552
        %698 = vrot.lane.b32.xlu0 %v690, 64
        %v699 = vpop.permute.xlu0 %698
        %700 = vrot.lane.b32.xlu0 %v691, 64
        %v701 = vpop.permute.xlu0 %700
        %v704 = vmul.f32 %v694, %v699
        %v705 = vmul.f32 %v695, %v701
        %v706 = vadd.f32 %v692, %v704
        %v707 = vadd.f32 %v693, %v705
        %v708 = vsel %vm608, %v706, 0.0
        %709 = vadd.xlane.f32.xlu0 %v708
        %v710 = vpop.xlane.xlu0 %709
        %v711 = vsel %vm608, %v707, 0.0
        %712 = vadd.xlane.f32.xlu0 %v711
        %v713 = vpop.xlane.xlu0 %712
        %v714 = vrcp.pop 32.0
        %v715 = vmul.f32 32.0, %v714
        %v716 = vsub.f32 1.0, %v715
        %v717 = vmul.f32 %v714, %v716
        %v718 = vadd.f32 %v714, %v717
        %vm719 = vweird.f32 %v714
        %v720 = vsel %vm719, %v714, %v718
        %v721 = vmul.f32 %v710, %v720
        %v722 = vmul.f32 %v713, %v720
        %v723 = vsub.f32 %v706, %v721
        %v724 = vsub.f32 %v707, %v722
        %v725 = vmul.f32 %v723, %v723
        %v726 = vmul.f32 %v724, %v724
        %v727 = vsel %vm608, %v725, 0.0
        %728 = vadd.xlane.f32.xlu0 %v727
        %v729 = vpop.xlane.xlu0 %728
        %v730 = vsel %vm608, %v726, 0.0
        %731 = vadd.xlane.f32.xlu0 %v730
        %v732 = vpop.xlane.xlu0 %731
        %v733 = vmul.f32 %v729, %v720
        %v734 = vmul.f32 %v732, %v720
        %v735 = vadd.f32 %v733, 1e-05
        %v736 = vadd.f32 %v734, 1e-05
        %v737 = vrsqrt.pop %v735
        %v738 = vmul.f32 %v737, %v735
        %v739 = vmul.f32 %v738, %v737
        %v740 = vmul.f32 0.5, %v739
        %v741 = vsub.f32 1.5, %v740
        %v742 = vmul.f32 %v737, %v741
        %vm743 = vweird.f32 %v735
        %vm744 = vweird.f32 %v737
        %vm745 = vmor %vm743, %vm744
        %v746 = vsel %vm745, %v737, %v742
        %v747 = vrsqrt.pop %v736
        %v748 = vmul.f32 %v747, %v736
        %v749 = vmul.f32 %v748, %v747
        %v750 = vmul.f32 0.5, %v749
        %v751 = vsub.f32 1.5, %v750
        %v752 = vmul.f32 %v747, %v751
        %vm753 = vweird.f32 %v736
        %vm754 = vweird.f32 %v747
        %vm755 = vmor %vm753, %vm754
        %v756 = vsel %vm755, %v747, %v752
        %v757 = vmul.f32 %v723, %v746
        %v758 = vmul.f32 %v724, %v756
        %v759 = vld [vmem:[%s6] sm:$0x1]
        %v761 = vperm.slane %v759, 0
        %v763 = vmul.f32 %v757, %v761
        %v764 = vmul.f32 %v758, %v761
        %v765 = vld [vmem:[%s7] sm:$0x1]
        %v767 = vperm.slane %v765, 0
        %v769 = vadd.f32 %v763, %v767
        %v770 = vadd.f32 %v764, %v767
        %771 = vst.msk [vmem:[%s340] sm:$0xff] %vm608, %v769
        %772 = vst.msk [vmem:[%s340 + $0x8] sm:$0xff] %vm608, %v770
        %s773 = sand.u32 %s211, 1
        %s774 = scalar_lea.sflag [#allocation4], %s773
        %s775 = sand.u32 %s211, 1
        %s776 = smul.addr %s775, 16
        %s777 = scalar_lea.vmem [#allocation5], %s776
        // Predicated region
        $region57: #{tpu_custom_call.1} parent=51 // pred_check
          %p778 = pneg %p221
        $region58: #{tpu_custom_call.1} parent=51 // pred_check_branch
          %780 = sbr.rel (%p778) target = $region60
        $region59: #{tpu_custom_call.1} parent=51 // pred_region
          %782 = vsyncadd %s774, 0
          %s783 = smul.addr %s25, 2
          %s784 = smul.addr %s783, 8
          %s785 = scalar_lea.hbm %s8, %s784
          %s786 = sshll.u32 %s777, 4
          %s787 = int_to_ptr.vmem [resolvable:$true] %s786
          %s788 = sshll.u32 %s785, 4
          %s789 = int_to_ptr.hbm [resolvable:$true] %s788
          %794 = dma.vmem_to_hbm [thread:$0]  %s787, 256, %s789, %s774, 128, 128, 8
        $region60: #{tpu_custom_call.1} parent=51 // pred_fallthru
          _
      $region52: #{tpu_custom_call.1} parent=5 // pred_fallthru
        _
      %p795 = scmp.le.s32.totalorder 2, %s20
      // Predicated region
      $region61: #{tpu_custom_call.1} parent=5 // pred_check
        %p796 = pneg %p795
      $region62: #{tpu_custom_call.1} parent=5 // pred_check_branch
        %798 = sbr.rel (%p796) target = $region64
      $region63: #{tpu_custom_call.1} parent=5 // pred_region
        %s799 = ssub.s32 %s20, 2
        // Predicated region
        $region65: #{tpu_custom_call.1} parent=63 // pred_check
          %p800 = pneg %p227
        $region66: #{tpu_custom_call.1} parent=63 // pred_check_branch
          %802 = sbr.rel (%p800) target = $region68
        $region67: #{tpu_custom_call.1} parent=63 // pred_region
          %s803 = sand.u32 %s212, 1
          %s804 = scalar_lea.sflag [#allocation4], %s803
          %s805 = sand.u32 %s212, 1
          %s806 = smul.addr %s805, 16
          %s807 = scalar_lea.vmem [#allocation5], %s806
          %809 = dma.done %s804, 256
        $region68: #{tpu_custom_call.1} parent=63 // pred_fallthru
          _
      $region64: #{tpu_custom_call.1} parent=5 // pred_fallthru
        _
    $region6: #{tpu_custom_call.1} parent=1 // loop_footer
      %s24 = sadd.s32 1, %s20
    $region7: #{tpu_custom_call.1} parent=1 // loop_footer_branch
      %19 = sbr.rel target = $region3
    $region8: #{tpu_custom_call.1} parent=1 // loop_exit
      _
    %810 = vsyncpa [#allocation3], 1
    %s811 = scalar_lea.sflag [#allocation3], 1
    %812 = vsyncpa %s811, 1
    %813 = vsyncpa [#allocation4], 1
    %s814 = scalar_lea.sflag [#allocation4], 1
    %815 = vsyncpa %s814, 1

</llo_original>
